<compile_context>
chip_gen: v7x
topology: tpu7x:2x2x1
jax: 0.10.0
libtpu: 0.0.40
codegen_flags: <defaults>
</compile_context>

<pallas_src>
import functools
import math

import jax
import jax.numpy as jnp
from jax.experimental import pallas as pl
from jax.experimental.pallas import tpu as pltpu

TM = 512            # GEMM M-tile preference
ROW_TILE = 256      # row tile for BN-apply / elementwise kernels
BN_EPS = 1e-5

_VMEM_LIMIT_CACHE = None


def _vmem_limit():
    """Generation-aware scoped-VMEM limit (48 MiB on 64-MiB parts, 96 MiB on 128)."""
    global _VMEM_LIMIT_CACHE
    if _VMEM_LIMIT_CACHE is None:
        cap = 64 << 20
        try:
            info = pltpu.get_tpu_info()
            cap = int(getattr(info, "vmem_capacity_bytes", cap) or cap)
        except Exception:
            pass
        _VMEM_LIMIT_CACHE = int(min(max(cap - (16 << 20), 32 << 20), 96 << 20))
    return _VMEM_LIMIT_CACHE


def _cparams(*sem):
    return pltpu.CompilerParams(dimension_semantics=sem,
                                vmem_limit_bytes=_vmem_limit())


def _round_up(x, m):
    return (x + m - 1) // m * m


def _tile(dim, pref, align):
    """Divisor-aware tile size: (tile, padded_dim). Full dim (no pad) if dim <= pref."""
    if dim <= pref:
        return dim, dim
    nb = -(-dim // pref)
    t = _round_up(-(-dim // nb), align)
    return t, t * nb


# --------------------------------------------------------------------------
# GEMM kernels (bf16 operands, f32 accumulator, fused per-column BN stats)
# --------------------------------------------------------------------------

def _gemm_epilogue(acc_ref, o_ref, stats_ref):
    acc = acc_ref[...]
    o_ref[...] = acc.astype(o_ref.dtype)
    stats_ref[0, 0:1, :] = jnp.sum(acc, axis=0, keepdims=True)
    stats_ref[0, 1:2, :] = jnp.sum(acc * acc, axis=0, keepdims=True)


def _gemm_kernel(a_ref, b_ref, o_ref, stats_ref, acc_ref):
    @pl.when(pl.program_id(2) == 0)
    def _():
        acc_ref[...] = jnp.zeros_like(acc_ref)

    acc_ref[...] += jnp.dot(a_ref[...], b_ref[...],
                            preferred_element_type=jnp.float32)

    @pl.when(pl.program_id(2) == pl.num_programs(2) - 1)
    def _():
        _gemm_epilogue(acc_ref, o_ref, stats_ref)


def _gemm_bias_kernel(a_ref, b_ref, bias_ref, o_ref, stats_ref, acc_ref):
    @pl.when(pl.program_id(2) == 0)
    def _():
        acc_ref[...] = jnp.broadcast_to(bias_ref[...].astype(jnp.float32),
                                        acc_ref.shape)

    acc_ref[...] += jnp.dot(a_ref[...], b_ref[...],
                            preferred_element_type=jnp.float32)

    @pl.when(pl.program_id(2) == pl.num_programs(2) - 1)
    def _():
        _gemm_epilogue(acc_ref, o_ref, stats_ref)


def pallas_matmul(a, b, bias=None, out_dtype=jnp.bfloat16):
    """a: [M,K], b: [K,N], optional bias [N].
    Returns (out [M,N] out_dtype, stats [2,N] f32) with stats = per-column
    (sum, sum of squares) over the M rows (for fused BatchNorm statistics)."""
    M, K = a.shape
    K2, N = b.shape
    assert K == K2
    a = a.astype(jnp.bfloat16)
    b = b.astype(jnp.bfloat16)

    tm, Mp = _tile(M, TM, 16)           # bf16 sublane packing -> multiples of 16
    tk, Kp = _tile(K, 1024, 128)        # K <= 1024 -> single full-K step, no pad
    tn, Np = _tile(N, 512, 128)         # N <= 512 -> j axis collapses to 1

    if (Mp, Kp) != (M, K):
        a = jnp.pad(a, ((0, Mp - M), (0, Kp - K)))
    if (Kp, Np) != (K, N):
        b = jnp.pad(b, ((0, Kp - K), (0, Np - N)))

    grid = (Mp // tm, Np // tn, Kp // tk)
    out_shape = (jax.ShapeDtypeStruct((Mp, Np), out_dtype),
                 jax.ShapeDtypeStruct((grid[0], 2, Np), jnp.float32))
    out_specs = (pl.BlockSpec((tm, tn), lambda i, j, k: (i, j)),
                 pl.BlockSpec((1, 2, tn), lambda i, j, k: (i, 0, j)))
    a_spec = pl.BlockSpec((tm, tk), lambda i, j, k: (i, k))
    b_spec = pl.BlockSpec((tk, tn), lambda i, j, k: (k, j))
    scratch = [pltpu.VMEM((tm, tn), jnp.float32)]
    cp = _cparams("parallel", "parallel", "arbitrary")

    if bias is None:
        out, stats = pl.pallas_call(
            _gemm_kernel, out_shape=out_shape, grid=grid,
            in_specs=[a_spec, b_spec], out_specs=out_specs,
            scratch_shapes=scratch, compiler_params=cp,
        )(a, b)
    else:
        bias_p = bias.astype(jnp.float32).reshape(1, N)
        if Np > N:
            bias_p = jnp.pad(bias_p, ((0, 0), (0, Np - N)))
        out, stats = pl.pallas_call(
            _gemm_bias_kernel, out_shape=out_shape, grid=grid,
            in_specs=[a_spec, b_spec,
                      pl.BlockSpec((1, tn), lambda i, j, k: (0, j))],
            out_specs=out_specs, scratch_shapes=scratch, compiler_params=cp,
        )(a, b, bias_p)

    stats = jnp.sum(stats, axis=0)                      # (2, Np)
    if Np > N:
        out = out[:, :N]
        stats = stats[:, :N]
    if Mp > M:
        out = out[:M]
        if bias is not None:
            # padded rows of A are zero -> they contributed `bias` to the stats
            bf = bias.astype(jnp.float32)
            pad_rows = float(Mp - M)
            stats = stats - jnp.stack([pad_rows * bf, pad_rows * bf * bf])
    return out, stats


# --------------------------------------------------------------------------
# Implicit-im2col convolution (grid over batch, taps accumulated in VMEM)
# --------------------------------------------------------------------------

def _conv_kernel(*refs, taps, Ho, Wo):
    """refs = (*phase_refs, w_ref, o_ref, stats_ref, acc_ref).
    Each phase_ref block is (1, Hq, Wq, Cin); weights (kh, kw, Cin, Cout);
    output block (1, Ho*Wo, Cout); stats block (1, 2, Cout); acc (Ho*Wo, Cout) f32."""
    n_phase = len(refs) - 4
    x_refs = refs[:n_phase]
    w_ref, o_ref, stats_ref, acc_ref = refs[n_phase:]

    acc_ref[...] = jnp.zeros_like(acc_ref)
    for (dh, dw, p, oh, ow) in taps:
        win = x_refs[p][0, oh:oh + Ho, ow:ow + Wo, :]
        a = win.reshape(Ho * Wo, win.shape[-1])
        acc_ref[...] += jnp.dot(a, w_ref[dh, dw],
                                preferred_element_type=jnp.float32)
    acc = acc_ref[...]
    o_ref[0] = acc.astype(o_ref.dtype)
    stats_ref[0, 0:1, :] = jnp.sum(acc, axis=0, keepdims=True)
    stats_ref[0, 1:2, :] = jnp.sum(acc * acc, axis=0, keepdims=True)


def _im2col(x, kh, kw, stride, pad):
    """Explicit im2col (used only for the small-Cin stem conv)."""
    N, H, W, C = x.shape
    Ho = (H + 2 * pad - kh) // stride + 1
    Wo = (W + 2 * pad - kw) // stride + 1
    xp = jnp.pad(x, ((0, 0), (pad, pad), (pad, pad), (0, 0)))
    cols = [xp[:, dh:dh + stride * Ho:stride, dw:dw + stride * Wo:stride, :]
            for dh in range(kh) for dw in range(kw)]
    patches = jnp.stack(cols, axis=3).reshape(N * Ho * Wo, kh * kw * C)
    return patches, Ho, Wo


def conv2d(x, w, *, stride, pad):
    """x: [N,H,W,Cin], w: [kh,kw,Cin,Cout] -> (out [N,Ho,Wo,Cout] bf16,
    stats [2,Cout] f32 = per-channel (sum, sumsq) of the conv output)."""
    kh, kw, cin, cout = w.shape
    N, H, W, _ = x.shape
    x = x.astype(jnp.bfloat16)
    w = w.astype(jnp.bfloat16)

    if kh == 1 and kw == 1:
        # 1x1 (downsample) conv: strided subsample + GEMM, no patch matrix.
        xs = x if stride == 1 else x[:, ::stride, ::stride, :]
        Ho, Wo = xs.shape[1], xs.shape[2]
        out, stats = pallas_matmul(xs.reshape(N * Ho * Wo, cin),
                                   w.reshape(cin, cout))
        return out.reshape(N, Ho, Wo, cout), stats

    if cin < 32:
        # Stem conv (7x7, Cin=3/4): per-tap K=Cin would starve the MXU in the
        # implicit kernel, so keep explicit im2col (K = kh*kw*Cin) here.
        # TODO(synk): space-to-depth / W-only im2col to cut the 49x patch blowup.
        patches, Ho, Wo = _im2col(x, kh, kw, stride, pad)
        out, stats = pallas_matmul(patches, w.reshape(kh * kw * cin, cout))
        return out.reshape(N, Ho, Wo, cout), stats

    Hp, Wp = H + 2 * pad, W + 2 * pad
    Ho = (Hp - kh) // stride + 1
    Wo = (Wp - kw) // stride + 1

    if stride == 1:
        phases = [jnp.pad(x, ((0, 0), (pad, pad), (pad, pad), (0, 0)))]
    else:
        # stride-s conv -> s*s phase tensors so every in-kernel window is stride-1
        He, We = _round_up(Hp, stride), _round_up(Wp, stride)
        xp = jnp.pad(x, ((0, 0), (pad, pad + He - Hp),
                         (pad, pad + We - Wp), (0, 0)))
        phases = [xp[:, ph::stride, pw::stride, :]
                  for ph in range(stride) for pw in range(stride)]

    taps = tuple((dh, dw,
                  (dh % stride) * stride + (dw % stride),
                  dh // stride, dw // stride)
                 for dh in range(kh) for dw in range(kw))
    ph_shape = phases[0].shape
    x_spec = pl.BlockSpec((1,) + ph_shape[1:], lambda n: (n, 0, 0, 0))
    w_spec = pl.BlockSpec(w.shape, lambda n: (0, 0, 0, 0))

    # TODO(synk): add output-row tiling (halo blocks) for very large spatial maps
    # so a single sample's activation never has to fit in VMEM.
    out, stats = pl.pallas_call(
        functools.partial(_conv_kernel, taps=taps, Ho=Ho, Wo=Wo),
        out_shape=(jax.ShapeDtypeStruct((N, Ho * Wo, cout), jnp.bfloat16),
                   jax.ShapeDtypeStruct((N, 2, cout), jnp.float32)),
        grid=(N,),
        in_specs=[x_spec] * len(phases) + [w_spec],
        out_specs=(pl.BlockSpec((1, Ho * Wo, cout), lambda n: (n, 0, 0)),
                   pl.BlockSpec((1, 2, cout), lambda n: (n, 0, 0))),
        scratch_shapes=[pltpu.VMEM((Ho * Wo, cout), jnp.float32)],
        compiler_params=_cparams("parallel"),
    )(*phases, w)
    return out.reshape(N, Ho, Wo, cout), jnp.sum(stats, axis=0)


# --------------------------------------------------------------------------
# BatchNorm apply (stats come fused from the conv/GEMM), pooling
# --------------------------------------------------------------------------

def _bn_apply_kernel(x_ref, scale_ref, shift_ref, o_ref, *, relu):
    y = x_ref[...].astype(jnp.float32) * scale_ref[...] + shift_ref[...]
    if relu:
        y = jnp.maximum(y, 0.0)
    o_ref[...] = y.astype(o_ref.dtype)


def _bn_apply_add_relu_kernel(x_ref, res_ref, scale_ref, shift_ref, o_ref):
    y = x_ref[...].astype(jnp.float32) * scale_ref[...] + shift_ref[...]
    y = y + res_ref[...].astype(jnp.float32)
    o_ref[...] = jnp.maximum(y, 0.0).astype(o_ref.dtype)


def _bn_apply_add_bn_relu_kernel(x_ref, res_ref, scale_ref, shift_ref,
                                 rs_ref, rt_ref, o_ref):
    y = x_ref[...].astype(jnp.float32) * scale_ref[...] + shift_ref[...]
    r = res_ref[...].astype(jnp.float32) * rs_ref[...] + rt_ref[...]
    o_ref[...] = jnp.maximum(y + r, 0.0).astype(o_ref.dtype)


def _bn_scale_shift(stats, gamma, beta, count):
    mean = stats[0] / count
    var = jnp.maximum(stats[1] / count - mean * mean, 0.0)   # biased variance
    scale = gamma.astype(jnp.float32) * jax.lax.rsqrt(var + BN_EPS)
    shift = beta.astype(jnp.float32) - mean * scale
    return scale, shift


def _bn_apply2(x2, scale_c, shift_c, C, *, relu, res2=None,
               res_scale_c=None, res_shift_c=None, out_dtype=jnp.bfloat16):
    """x2: [R, L] lane-dense view with L = Wg*C (column l -> channel l % C)."""
    R, L = x2.shape
    Wg = L // C
    if R <= ROW_TILE:
        tr, Rp = R, R
    else:
        tr, Rp = ROW_TILE, _round_up(R, ROW_TILE)

    def padrows(t):
        return jnp.pad(t, ((0, Rp - R), (0, 0))) if Rp > R else t

    def lane(v):
        return jnp.tile(v.astype(jnp.float32), Wg).reshape(1, L)

    row_spec = pl.BlockSpec((tr, L), lambda i: (i, 0))
    vec_spec = pl.BlockSpec((1, L), lambda i: (0, 0))
    cp = _cparams("parallel")
    xp = padrows(x2)

    if res2 is None:
        out = pl.pallas_call(
            functools.partial(_bn_apply_kernel, relu=relu),
            out_shape=jax.ShapeDtypeStruct((Rp, L), out_dtype),
            grid=(Rp // tr,),
            in_specs=[row_spec, vec_spec, vec_spec],
            out_specs=row_spec, compiler_params=cp,
        )(xp, lane(scale_c), lane(shift_c))
    elif res_scale_c is None:
        out = pl.pallas_call(
            _bn_apply_add_relu_kernel,
            out_shape=jax.ShapeDtypeStruct((Rp, L), out_dtype),
            grid=(Rp // tr,),
            in_specs=[row_spec, row_spec, vec_spec, vec_spec],
            out_specs=row_spec, compiler_params=cp,
        )(xp, padrows(res2), lane(scale_c), lane(shift_c))
    else:
        out = pl.pallas_call(
            _bn_apply_add_bn_relu_kernel,
            out_shape=jax.ShapeDtypeStruct((Rp, L), out_dtype),
            grid=(Rp // tr,),
            in_specs=[row_spec, row_spec, vec_spec, vec_spec, vec_spec, vec_spec],
            out_specs=row_spec, compiler_params=cp,
        )(xp, padrows(res2), lane(scale_c), lane(shift_c),
          lane(res_scale_c), lane(res_shift_c))
    return out[:R] if Rp > R else out


def bn2d_from_stats(x, stats, gamma, beta, *, relu, out_dtype=jnp.bfloat16):
    N, H, W, C = x.shape
    scale, shift = _bn_scale_shift(stats, gamma, beta, N * H * W)
    y = _bn_apply2(x.reshape(N * H, W * C), scale, shift, C,
                   relu=relu, out_dtype=out_dtype)
    return y.reshape(N, H, W, C)


def bn2d_add_relu_from_stats(x, stats, gamma, beta, *, res, res_stats=None,
                             res_gamma=None, res_beta=None):
    """y = relu(bn(x) + identity); identity is either an already-normalized tensor
    (res_stats=None) or a raw downsample-conv output with its own fused BN."""
    N, H, W, C = x.shape
    count = N * H * W
    scale, shift = _bn_scale_shift(stats, gamma, beta, count)
    rs = rt = None
    if res_stats is not None:
        rs, rt = _bn_scale_shift(res_stats, res_gamma, res_beta, count)
    y = _bn_apply2(x.reshape(N * H, W * C), scale, shift, C, relu=True,
                   res2=res.reshape(N * H, W * C),
                   res_scale_c=rs, res_shift_c=rt)
    return y.reshape(N, H, W, C)


def bn1d_from_stats(x, stats, gamma, beta, *, relu, out_dtype):
    Nb, C = x.shape
    scale, shift = _bn_scale_shift(stats, gamma, beta, Nb)
    return _bn_apply2(x, scale, shift, C, relu=relu, out_dtype=out_dtype)


def _maxpool_kernel(*refs, taps, Ho, Wo):
    x_refs = refs[:-1]
    o_ref = refs[-1]
    m = None
    for (p, oh, ow) in taps:
        win = x_refs[p][0, oh:oh + Ho, ow:ow + Wo, :]
        m = win if m is None else jnp.maximum(m, win)
    o_ref[0] = m


def maxpool_3x3_s2_p1(x):
    """3x3 stride-2 pad-1 max pool; input read once per sample (4 stride phases)."""
    N, H, W, C = x.shape
    Hp, Wp = H + 2, W + 2
    Ho, Wo = (Hp - 3) // 2 + 1, (Wp - 3) // 2 + 1
    He, We = _round_up(Hp, 2), _round_up(Wp, 2)
    xp = jnp.pad(x, ((0, 0), (1, 1 + He - Hp), (1, 1 + We - Wp), (0, 0)),
                 constant_values=-jnp.inf)
    phases = [xp[:, ph::2, pw::2, :] for ph in range(2) for pw in range(2)]
    taps = tuple(((dh % 2) * 2 + (dw % 2), dh // 2, dw // 2)
                 for dh in range(3) for dw in range(3))
    ph_shape = phases[0].shape
    x_spec = pl.BlockSpec((1,) + ph_shape[1:], lambda n: (n, 0, 0, 0))
    out = pl.pallas_call(
        functools.partial(_maxpool_kernel, taps=taps, Ho=Ho, Wo=Wo),
        out_shape=jax.ShapeDtypeStruct((N, Ho, Wo, C), x.dtype),
        grid=(N,),
        in_specs=[x_spec] * 4,
        out_specs=pl.BlockSpec((1, Ho, Wo, C), lambda n: (n, 0, 0, 0)),
        compiler_params=_cparams("parallel"),
    )(*phases)
    return out


def _global_avgpool_kernel(x_ref, o_ref):
    o_ref[...] = jnp.mean(x_ref[...].astype(jnp.float32), axis=1)


def global_avgpool(x):
    """NHWC -> [N, C] f32 (mean over H*W)."""
    N, H, W, C = x.shape
    x3 = x.reshape(N, H * W, C)
    nb = min(N, 8)
    Np = _round_up(N, nb)
    if Np > N:
        x3 = jnp.pad(x3, ((0, Np - N), (0, 0), (0, 0)))
    out = pl.pallas_call(
        _global_avgpool_kernel,
        out_shape=jax.ShapeDtypeStruct((Np, C), jnp.float32),
        grid=(Np // nb,),
        in_specs=[pl.BlockSpec((nb, H * W, C), lambda i: (i, 0, 0))],
        out_specs=pl.BlockSpec((nb, C), lambda i: (i, 0)),
        compiler_params=_cparams("parallel"),
    )(x3)
    return out[:N] if Np > N else out


# --------------------------------------------------------------------------
# ResNet18 backbone + projection head
# --------------------------------------------------------------------------

def init_params(key, in_channels, embedding_size):
    keys = iter(jax.random.split(key, 64))

    def conv_w(kh, kw, cin, cout):
        fan_in = kh * kw * cin
        return jax.random.normal(next(keys), (kh, kw, cin, cout),
                                 jnp.float32) / math.sqrt(fan_in)

    def bn_p(c):
        return jnp.ones((c,), jnp.float32), jnp.zeros((c,), jnp.float32)

    def linear_p(cin, cout):
        bound = 1.0 / math.sqrt(cin)
        w = jax.random.uniform(next(keys), (cin, cout), jnp.float32, -bound, bound)
        b = jax.random.uniform(next(keys), (cout,), jnp.float32, -bound, bound)
        return w, b

    params = {
        'conv1_w': conv_w(7, 7, in_channels, 64),   # replaced conv1 (stride 2, pad 3)
        'bn1': bn_p(64),
    }
    layer_cfg = [(64, 64, 1), (64, 128, 2), (128, 256, 2), (256, 512, 2)]
    layers = []
    for cin, cout, stride in layer_cfg:
        blocks = []
        for bidx in range(2):
            b_cin = cin if bidx == 0 else cout
            b_stride = stride if bidx == 0 else 1
            blk = {
                'stride': b_stride,
                'conv1_w': conv_w(3, 3, b_cin, cout),
                'bn1': bn_p(cout),
                'conv2_w': conv_w(3, 3, cout, cout),
                'bn2': bn_p(cout),
            }
            if b_stride != 1 or b_cin != cout:
                blk['down_w'] = conv_w(1, 1, b_cin, cout)
                blk['down_bn'] = bn_p(cout)
            blocks.append(blk)
        layers.append(blocks)
    params['layers'] = layers

    # projection head: Linear(512,512), BN1d(512), ReLU, Linear(512,emb), BN1d(emb)
    params['proj_w1'], params['proj_b1'] = linear_p(512, 512)
    params['proj_bn1'] = bn_p(512)
    params['proj_w2'], params['proj_b2'] = linear_p(512, embedding_size)
    params['proj_bn2'] = bn_p(embedding_size)
    return params


def basic_block(x, p):
    raw1, st1 = conv2d(x, p['conv1_w'], stride=p['stride'], pad=1)
    y1 = bn2d_from_stats(raw1, st1, *p['bn1'], relu=True)
    raw2, st2 = conv2d(y1, p['conv2_w'], stride=1, pad=1)
    if 'down_w' in p:
        ds_raw, ds_st = conv2d(x, p['down_w'], stride=p['stride'], pad=0)
        return bn2d_add_relu_from_stats(
            raw2, st2, *p['bn2'], res=ds_raw, res_stats=ds_st,
            res_gamma=p['down_bn'][0], res_beta=p['down_bn'][1])
    return bn2d_add_relu_from_stats(raw2, st2, *p['bn2'], res=x)


def add_resnet_projection_forward(params, x_nchw, return_embedding=False):
    # NCHW (PyTorch) -> NHWC (kernel layout); bf16 activations between kernels.
    x = jnp.transpose(x_nchw, (0, 2, 3, 1)).astype(jnp.bfloat16)

    raw, st = conv2d(x, params['conv1_w'], stride=2, pad=3)
    x = bn2d_from_stats(raw, st, *params['bn1'], relu=True)
    x = maxpool_3x3_s2_p1(x)
    for layer in params['layers']:
        for blk in layer:
            x = basic_block(x, blk)
    embedding = global_avgpool(x)          # backbone.fc = Identity -> [N, 512] f32
    if return_embedding:
        return embedding

    # TODO(synk): fully fuse the projection head (Linear->BN->ReLU->Linear->BN)
    # into a single pallas_call for small-batch inference.
    h, st = pallas_matmul(embedding, params['proj_w1'], params['proj_b1'])
    h = bn1d_from_stats(h, st, *params['proj_bn1'], relu=True,
                        out_dtype=jnp.bfloat16)
    h, st = pallas_matmul(h, params['proj_w2'], params['proj_b2'])
    return bn1d_from_stats(h, st, *params['proj_bn2'], relu=False,
                           out_dtype=jnp.float32)


if __name__ == "__main__":
    key = jax.random.PRNGKey(0)
    pkey, xkey = jax.random.split(key)

    in_channels, embedding_size = 4, 32
    params = init_params(pkey, in_channels, embedding_size)

    # small deterministic input, NCHW like the PyTorch module expects
    x = jax.random.normal(xkey, (2, in_channels, 16, 16), jnp.float32)

    out = add_resnet_projection_forward(params, x)
    jax.block_until_ready(out)
    assert out.shape == (2, embedding_size), out.shape
    assert bool(jnp.all(jnp.isfinite(out)))
    print("KERNEL_OK")
</pallas_src>

<mosaic_0001>
module attributes {stable_mosaic.version = 11 : i64} {
  func.func @_gemm_kernel(%arg0: i32, %arg1: i32, %arg2: i32, %arg3: memref<128x196xbf16, #tpu.memory_space<vmem>>, %arg4: memref<196x64xbf16, #tpu.memory_space<vmem>>, %arg5: memref<128x64xbf16, #tpu.memory_space<vmem>>, %arg6: memref<1x2x64xf32, #tpu.memory_space<vmem>>, %arg7: memref<128x64xf32, #tpu.memory_space<vmem>>) attributes {dimension_semantics = [#tpu.dimension_semantics<parallel>, #tpu.dimension_semantics<parallel>, #tpu.dimension_semantics<arbitrary>], iteration_bounds = array<i64: 1, 1, 1>, scalar_prefetch = 0 : i64, scratch_operands = 1 : i64, tpu.core_type = #tpu.core_type<tc>, window_params = [{transform_indices = @transform_0, window_bounds = array<i64: 128, 196>}, {transform_indices = @transform_1, window_bounds = array<i64: 196, 64>}, {transform_indices = @transform_2, window_bounds = array<i64: 128, 64>}, {transform_indices = @transform_3, window_bounds = array<i64: 1, 2, 64>}]} {
    %c0_i32 = arith.constant 0 : i32
    %0 = arith.cmpi eq, %arg2, %c0_i32 : i32
    %1 = arith.extui %0 : i1 to i32
    %c0_i32_0 = arith.constant 0 : i32
    %2 = arith.cmpi ne, %1, %c0_i32_0 : i32
    scf.if %2 {
      %cst_10 = arith.constant 0.000000e+00 : f32
      %12 = vector.broadcast %cst_10 : f32 to vector<128x64xf32>
      %c0_11 = arith.constant 0 : index
      %c0_12 = arith.constant 0 : index
      %13 = vector.load %arg7[%c0_11, %c0_12] : memref<128x64xf32, #tpu.memory_space<vmem>>, vector<128x64xf32>
      tpu.vector_store %arg7[%c0_11, %c0_12], %12 {strides = array<i32>} : memref<128x64xf32, #tpu.memory_space<vmem>>, vector<128x64xf32>,
    } else {
    }
    %c0 = arith.constant 0 : index
    %c0_1 = arith.constant 0 : index
    %3 = vector.load %arg7[%c0, %c0_1] : memref<128x64xf32, #tpu.memory_space<vmem>>, vector<128x64xf32>
    %c0_2 = arith.constant 0 : index
    %c0_3 = arith.constant 0 : index
    %4 = vector.load %arg3[%c0_2, %c0_3] : memref<128x196xbf16, #tpu.memory_space<vmem>>, vector<128x196xbf16>
    %c0_4 = arith.constant 0 : index
    %c0_5 = arith.constant 0 : index
    %5 = vector.load %arg4[%c0_4, %c0_5] : memref<196x64xbf16, #tpu.memory_space<vmem>>, vector<196x64xbf16>
    %cst = arith.constant dense<0.000000e+00> : vector<128x64xf32>
    %6 = tpu.matmul %4, %5, %cst {dimension_numbers = #tpu.dot_dimension_numbers<[1], [0], [0], [1], [0, 0, 1, 1], [], []>} : vector<128x196xbf16>, vector<196x64xbf16>, vector<128x64xf32> -> vector<128x64xf32>
    %7 = arith.addf %3, %6 : vector<128x64xf32>
    %c0_6 = arith.constant 0 : index
    %c0_7 = arith.constant 0 : index
    %8 = vector.load %arg7[%c0_6, %c0_7] : memref<128x64xf32, #tpu.memory_space<vmem>>, vector<128x64xf32>
    tpu.vector_store %arg7[%c0_6, %c0_7], %7 {strides = array<i32>} : memref<128x64xf32, #tpu.memory_space<vmem>>, vector<128x64xf32>,
    %c0_i32_8 = arith.constant 0 : i32
    %9 = arith.cmpi eq, %arg2, %c0_i32_8 : i32
    %10 = arith.extui %9 : i1 to i32
    %c0_i32_9 = arith.constant 0 : i32
    %11 = arith.cmpi ne, %10, %c0_i32_9 : i32
    scf.if %11 {
      %c0_10 = arith.constant 0 : index
      %c0_11 = arith.constant 0 : index
      %12 = vector.load %arg7[%c0_10, %c0_11] : memref<128x64xf32, #tpu.memory_space<vmem>>, vector<128x64xf32>
      %13 = arith.truncf %12 : vector<128x64xf32> to vector<128x64xbf16>
      %c0_12 = arith.constant 0 : index
      %c0_13 = arith.constant 0 : index
      %14 = vector.load %arg5[%c0_12, %c0_13] : memref<128x64xbf16, #tpu.memory_space<vmem>>, vector<128x64xbf16>
      tpu.vector_store %arg5[%c0_12, %c0_13], %13 {strides = array<i32>} : memref<128x64xbf16, #tpu.memory_space<vmem>>, vector<128x64xbf16>,
      %cst_14 = arith.constant dense<0.000000e+00> : vector<64xf32>
      %15 = vector.multi_reduction <add>, %12, %cst_14 [0] : vector<128x64xf32> to vector<64xf32>
      %16 = vector.shape_cast %15 : vector<64xf32> to vector<1x64xf32>
      %c0_15 = arith.constant 0 : index
      %c0_16 = arith.constant 0 : index
      %c0_17 = arith.constant 0 : index
      %17 = vector.load %arg6[%c0_15, %c0_16, %c0_17] : memref<1x2x64xf32, #tpu.memory_space<vmem>>, vector<1x1x64xf32>
      %18 = vector.shape_cast %17 : vector<1x1x64xf32> to vector<1x64xf32>
      %19 = vector.shape_cast %16 : vector<1x64xf32> to vector<1x1x64xf32>
      tpu.vector_store %arg6[%c0_15, %c0_16, %c0_17], %19 {strides = array<i32>} : memref<1x2x64xf32, #tpu.memory_space<vmem>>, vector<1x1x64xf32>,
      %20 = arith.mulf %12, %12 : vector<128x64xf32>
      %cst_18 = arith.constant dense<0.000000e+00> : vector<64xf32>
      %21 = vector.multi_reduction <add>, %20, %cst_18 [0] : vector<128x64xf32> to vector<64xf32>
      %22 = vector.shape_cast %21 : vector<64xf32> to vector<1x64xf32>
      %c0_19 = arith.constant 0 : index
      %c1 = arith.constant 1 : index
      %c0_20 = arith.constant 0 : index
      %23 = vector.load %arg6[%c0_19, %c1, %c0_20] : memref<1x2x64xf32, #tpu.memory_space<vmem>>, vector<1x1x64xf32>
      %24 = vector.shape_cast %23 : vector<1x1x64xf32> to vector<1x64xf32>
      %25 = vector.shape_cast %22 : vector<1x64xf32> to vector<1x1x64xf32>
      tpu.vector_store %arg6[%c0_19, %c1, %c0_20], %25 {strides = array<i32>} : memref<1x2x64xf32, #tpu.memory_space<vmem>>, vector<1x1x64xf32>,
    } else {
    }
    return
  }
  func.func @transform_0(%arg0: i32, %arg1: i32, %arg2: i32) -> (i32, i32) {
    %c0_i32 = arith.constant 0 : i32
    return %arg0, %arg2 : i32, i32
  }
  func.func @transform_1(%arg0: i32, %arg1: i32, %arg2: i32) -> (i32, i32) {
    %c0_i32 = arith.constant 0 : i32
    return %arg2, %arg1 : i32, i32
  }
  func.func @transform_2(%arg0: i32, %arg1: i32, %arg2: i32) -> (i32, i32) {
    %c0_i32 = arith.constant 0 : i32
    return %arg0, %arg1 : i32, i32
  }
  func.func @transform_3(%arg0: i32, %arg1: i32, %arg2: i32) -> (i32, i32, i32) {
    %c0_i32 = arith.constant 0 : i32
    %c0_i32_0 = arith.constant 0 : i32
    return %arg0, %c0_i32, %arg1 : i32, i32, i32
  }
}

</mosaic_0001>

<llo_original>
// kernel: tpu_custom_call.1
$region0: #{tpu_custom_call.1}
  #allocation0 [shape = 'u32[]', space=smem, size = 0x4, offset = 0x4, fixed_abs, tag = 'smem constant byte address 0x4 - core index']
  #allocation1 [shape = 'u32[144,128]{1,0:T(1,128)}', space=vmem, size = 0x12000, scoped, tag = 'internal scratch']
  #allocation2 [shape = 'f32[128,64]{1,0:T(8,128)}', space=vmem, size = 0x10000, scoped, tag = 'scratch operand']
  %s0 = inlined_call_operand.vmem [shape: bf16[128,196], index: 0, kind: input, shape index: {}]
  %s1 = inlined_call_operand.vmem [shape: bf16[196,64], index: 1, kind: input, shape index: {}]
  %s2 = inlined_call_operand.vmem [shape: bf16[128,64], index: 2, kind: output, shape index: {0}]
  %s3 = inlined_call_operand.hbm [shape: f32[1,2,64], index: 3, kind: output, shape index: {1}]
  %4 = xla_tuple %s2, %s3
  %s5 = sld [smem:[#allocation0]]
  $region34: #{tpu_custom_call.1} parent=0
    _
  %s7 = ssub.s32 1, %s5
  %s8 = scalar_select 0, %s7, %s5
  $region1: #{tpu_custom_call.1} parent=0
    #allocation3 [shape = 'u8[1024]{0}', space=vmem, size = 0x400, scoped, tag = 'output window, operand 1, single buffered']
    #allocation4 [shape = 's32[1]{0}', space=sflag, size = 0x4, scoped, tag = 'scoped memory for tpu_custom_call.1']
    %9 = vsyncpa [#allocation4], 0
    // Predicated region
    $region2: #{tpu_custom_call.1} parent=1 // pred_check
      _
    $region3: #{tpu_custom_call.1} parent=1 // pred_check_branch
      %11 = sbr.rel (0) target = $region5
    $region4: #{tpu_custom_call.1} parent=1 // pred_region
      _
    $region5: #{tpu_custom_call.1} parent=1 // pred_fallthru
      _
    // Predicated region
    $region6: #{tpu_custom_call.1} parent=1 // pred_check
      _
    $region7: #{tpu_custom_call.1} parent=1 // pred_check_branch
      %13 = sbr.rel (0) target = $region9
    $region8: #{tpu_custom_call.1} parent=1 // pred_region
      _
    $region9: #{tpu_custom_call.1} parent=1 // pred_fallthru
      _
    %p15 = scmp.eq.s32.totalorder 0, 0
    // Predicated region
    $region10: #{tpu_custom_call.1} parent=1 // pred_check
      %p16 = pneg %p15
    $region11: #{tpu_custom_call.1} parent=1 // pred_check_branch
      %18 = sbr.rel (%p16) target = $region13
    $region12: #{tpu_custom_call.1} parent=1 // pred_region
      %vm19 = vcmask 523264
      %20 = vst.msk [vmem:[#allocation2] sm:$0xff] %vm19, 0.0
      %21 = vst.msk [vmem:[#allocation2 + $0x8] sm:$0xff] %vm19, 0.0
      %22 = vst.msk [vmem:[#allocation2 + $0x10] sm:$0xff] %vm19, 0.0
      %23 = vst.msk [vmem:[#allocation2 + $0x18] sm:$0xff] %vm19, 0.0
      %24 = vst.msk [vmem:[#allocation2 + $0x20] sm:$0xff] %vm19, 0.0
      %25 = vst.msk [vmem:[#allocation2 + $0x28] sm:$0xff] %vm19, 0.0
      %26 = vst.msk [vmem:[#allocation2 + $0x30] sm:$0xff] %vm19, 0.0
      %27 = vst.msk [vmem:[#allocation2 + $0x38] sm:$0xff] %vm19, 0.0
      %28 = vst.msk [vmem:[#allocation2 + $0x40] sm:$0xff] %vm19, 0.0
      %29 = vst.msk [vmem:[#allocation2 + $0x48] sm:$0xff] %vm19, 0.0
      %30 = vst.msk [vmem:[#allocation2 + $0x50] sm:$0xff] %vm19, 0.0
      %31 = vst.msk [vmem:[#allocation2 + $0x58] sm:$0xff] %vm19, 0.0
      %32 = vst.msk [vmem:[#allocation2 + $0x60] sm:$0xff] %vm19, 0.0
      %33 = vst.msk [vmem:[#allocation2 + $0x68] sm:$0xff] %vm19, 0.0
      %34 = vst.msk [vmem:[#allocation2 + $0x70] sm:$0xff] %vm19, 0.0
      %35 = vst.msk [vmem:[#allocation2 + $0x78] sm:$0xff] %vm19, 0.0
    $region13: #{tpu_custom_call.1} parent=1 // pred_fallthru
      _
    %v36 = vld [vmem:[#allocation2] sm:$0xff]
    %v37 = vld [vmem:[#allocation2 + $0x8] sm:$0xff]
    %v38 = vld [vmem:[#allocation2 + $0x10] sm:$0xff]
    %v39 = vld [vmem:[#allocation2 + $0x18] sm:$0xff]
    %v40 = vld [vmem:[#allocation2 + $0x20] sm:$0xff]
    %v41 = vld [vmem:[#allocation2 + $0x28] sm:$0xff]
    %v42 = vld [vmem:[#allocation2 + $0x30] sm:$0xff]
    %v43 = vld [vmem:[#allocation2 + $0x38] sm:$0xff]
    %v44 = vld [vmem:[#allocation2 + $0x40] sm:$0xff]
    %v45 = vld [vmem:[#allocation2 + $0x48] sm:$0xff]
    %v46 = vld [vmem:[#allocation2 + $0x50] sm:$0xff]
    %v47 = vld [vmem:[#allocation2 + $0x58] sm:$0xff]
    %v48 = vld [vmem:[#allocation2 + $0x60] sm:$0xff]
    %v49 = vld [vmem:[#allocation2 + $0x68] sm:$0xff]
    %v50 = vld [vmem:[#allocation2 + $0x70] sm:$0xff]
    %v51 = vld [vmem:[#allocation2 + $0x78] sm:$0xff]
    %v52 = vld [vmem:[%s0] sm:$0xff]
    %v53 = vld [vmem:[%s0 + $0x8] sm:$0xff]
    %v54 = vld [vmem:[%s0 + $0x10] sm:$0xff]
    %v55 = vld [vmem:[%s0 + $0x18] sm:$0xff]
    %v56 = vld [vmem:[%s0 + $0x20] sm:$0xff]
    %v57 = vld [vmem:[%s0 + $0x28] sm:$0xff]
    %v58 = vld [vmem:[%s0 + $0x30] sm:$0xff]
    %v59 = vld [vmem:[%s0 + $0x38] sm:$0xff]
    %v60 = vld [vmem:[%s0 + $0x40] sm:$0xff]
    %v61 = vld [vmem:[%s0 + $0x48] sm:$0xff]
    %v62 = vld [vmem:[%s0 + $0x50] sm:$0xff]
    %v63 = vld [vmem:[%s0 + $0x58] sm:$0xff]
    %v64 = vld [vmem:[%s0 + $0x60] sm:$0xff]
    %v65 = vld [vmem:[%s0 + $0x68] sm:$0xff]
    %v66 = vld [vmem:[%s0 + $0x70] sm:$0xff]
    %v67 = vld [vmem:[%s0 + $0x78] sm:$0xff]
    %v68 = vld [vmem:[%s1] sm:$0xf]
    %v69 = vld [vmem:[%s1 + $0x4] sm:$0xf]
    %v70 = vld [vmem:[%s1 + $0x8] sm:$0xf]
    %v71 = vld [vmem:[%s1 + $0xc] sm:$0xf]
    %v72 = vld [vmem:[%s1 + $0x10] sm:$0xf]
    %v73 = vld [vmem:[%s1 + $0x14] sm:$0xf]
    %v74 = vld [vmem:[%s1 + $0x18] sm:$0xf]
    %v75 = vld [vmem:[%s1 + $0x1c] sm:$0xf]
    %v76 = vld [vmem:[%s1 + $0x20] sm:$0xf]
    %v77 = vld [vmem:[%s1 + $0x24] sm:$0xf]
    %v78 = vld [vmem:[%s1 + $0x28] sm:$0xf]
    %v79 = vld [vmem:[%s1 + $0x2c] sm:$0xf]
    %v80 = vld [vmem:[%s1 + $0x30] sm:$0xf]
    %v81 = vld [vmem:[%s1 + $0x34] sm:$0xf]
    %v82 = vld [vmem:[%s1 + $0x38] sm:$0xf]
    %v83 = vld [vmem:[%s1 + $0x3c] sm:$0xf]
    %v84 = vld [vmem:[%s1 + $0x40] sm:$0xf]
    %v85 = vld [vmem:[%s1 + $0x44] sm:$0xf]
    %v86 = vld [vmem:[%s1 + $0x48] sm:$0xf]
    %v87 = vld [vmem:[%s1 + $0x4c] sm:$0xf]
    %v88 = vld [vmem:[%s1 + $0x50] sm:$0xf]
    %v89 = vld [vmem:[%s1 + $0x54] sm:$0xf]
    %v90 = vld [vmem:[%s1 + $0x58] sm:$0xf]
    %v91 = vld [vmem:[%s1 + $0x5c] sm:$0xf]
    %v92 = vld [vmem:[%s1 + $0x60] sm:$0x3]
    %v109 = vunpack.c.l.b16 %v52
    %v110 = vunpack.c.h.b16 %v52
    %v111 = vunpack.c.l.b16 %v53
    %v112 = vunpack.c.h.b16 %v53
    %v113 = vunpack.c.l.b16 %v54
    %v114 = vunpack.c.h.b16 %v54
    %v115 = vunpack.c.l.b16 %v55
    %v116 = vunpack.c.h.b16 %v55
    %v117 = vunpack.c.l.b16 %v56
    %v118 = vunpack.c.h.b16 %v56
    %v119 = vunpack.c.l.b16 %v57
    %v120 = vunpack.c.h.b16 %v57
    %v121 = vunpack.c.l.b16 %v58
    %v122 = vunpack.c.h.b16 %v58
    %v123 = vunpack.c.l.b16 %v59
    %v124 = vunpack.c.h.b16 %v59
    %v125 = vunpack.c.l.b16 %v60
    %v126 = vunpack.c.h.b16 %v60
    %v127 = vunpack.c.l.b16 %v61
    %v128 = vunpack.c.h.b16 %v61
    %v129 = vunpack.c.l.b16 %v62
    %v130 = vunpack.c.h.b16 %v62
    %v131 = vunpack.c.l.b16 %v63
    %v132 = vunpack.c.h.b16 %v63
    %v133 = vunpack.c.l.b16 %v64
    %v134 = vunpack.c.h.b16 %v64
    %v135 = vunpack.c.l.b16 %v65
    %v136 = vunpack.c.h.b16 %v65
    %v137 = vunpack.c.l.b16 %v66
    %v138 = vunpack.c.h.b16 %v66
    %v139 = vunpack.c.l.b16 %v67
    %v140 = vunpack.c.h.b16 %v67
    %v141 = vpack.c.b16 %v111, %v109
    %v142 = vpack.c.b16 %v112, %v110
    %v143 = vpack.c.b16 %v115, %v113
    %v144 = vpack.c.b16 %v116, %v114
    %v145 = vpack.c.b16 %v119, %v117
    %v146 = vpack.c.b16 %v120, %v118
    %v147 = vpack.c.b16 %v123, %v121
    %v148 = vpack.c.b16 %v124, %v122
    %v149 = vpack.c.b16 %v127, %v125
    %v150 = vpack.c.b16 %v128, %v126
    %v151 = vpack.c.b16 %v131, %v129
    %v152 = vpack.c.b16 %v132, %v130
    %v153 = vpack.c.b16 %v135, %v133
    %v154 = vpack.c.b16 %v136, %v134
    %v155 = vpack.c.b16 %v139, %v137
    %v156 = vpack.c.b16 %v140, %v138
    %v190 = vunpack.c.l.b16 %v68
    %v191 = vunpack.c.l.b16 %v69
    %v192 = vunpack.c.l.b16 %v70
    %v193 = vunpack.c.l.b16 %v71
    %v194 = vunpack.c.l.b16 %v72
    %v195 = vunpack.c.l.b16 %v73
    %v196 = vunpack.c.l.b16 %v74
    %v197 = vunpack.c.l.b16 %v75
    %v198 = vunpack.c.l.b16 %v76
    %v199 = vunpack.c.l.b16 %v77
    %v200 = vunpack.c.l.b16 %v78
    %v201 = vunpack.c.l.b16 %v79
    %v202 = vunpack.c.l.b16 %v80
    %v203 = vunpack.c.l.b16 %v81
    %v204 = vunpack.c.l.b16 %v82
    %v205 = vunpack.c.l.b16 %v83
    %v206 = vunpack.c.l.b16 %v84
    %v207 = vunpack.c.l.b16 %v85
    %v208 = vunpack.c.l.b16 %v86
    %v209 = vunpack.c.l.b16 %v87
    %v210 = vunpack.c.l.b16 %v88
    %v211 = vunpack.c.l.b16 %v89
    %v212 = vunpack.c.l.b16 %v90
    %v213 = vunpack.c.l.b16 %v91
    %v214 = vunpack.c.l.b16 %v92
    %v215 = vpack.c.b16 %v191, %v190
    %v216 = vpack.c.b16 %v193, %v192
    %v217 = vpack.c.b16 %v195, %v194
    %v218 = vpack.c.b16 %v197, %v196
    %v219 = vpack.c.b16 %v199, %v198
    %v220 = vpack.c.b16 %v201, %v200
    %v221 = vpack.c.b16 %v203, %v202
    %v222 = vpack.c.b16 %v205, %v204
    %v223 = vpack.c.b16 %v207, %v206
    %v224 = vpack.c.b16 %v209, %v208
    %v225 = vpack.c.b16 %v211, %v210
    %v226 = vpack.c.b16 %v213, %v212
    %v227 = vpack.c.b16 %v214, %v214
    %vm240 = vcmask 556032
    %v242 = vsel %vm240, %v142, 0
    %v245 = vsel %vm240, %v144, 0
    %v248 = vsel %vm240, %v146, 0
    %v251 = vsel %vm240, %v148, 0
    %v254 = vsel %vm240, %v150, 0
    %v257 = vsel %vm240, %v152, 0
    %v260 = vsel %vm240, %v154, 0
    %v263 = vsel %vm240, %v156, 0
    %vm265 = vcmask 1041408
    %v267 = vsel %vm265, %v227, 0
    %269 = vmatprep.subr.bf16.mxu0 0
    %270 = vmatpush1.bf16.msra.mxu0 %v215
    %271 = vmatprep.subr.bf16.mxu0 0
    %272 = vmatpush1.bf16.msra.mxu0 %v216
    %273 = vmatprep.subr.bf16.mxu0 0
    %274 = vmatpush1.bf16.msra.mxu0 %v217
    %275 = vmatprep.subr.bf16.mxu0 0
    %276 = vmatpush1.bf16.msra.mxu0 %v218
    %277 = vmatprep.subr.bf16.mxu0 0
    %278 = vmatpush1.bf16.msra.mxu0 %v219
    %279 = vmatprep.subr.bf16.mxu0 0
    %280 = vmatpush1.bf16.msra.mxu0 %v220
    %281 = vmatprep.subr.bf16.mxu0 0
    %282 = vmatpush1.bf16.msra.mxu0 %v221
    %283 = vmatprep.subr.bf16.mxu0 0
    %284 = vmatpush1.bf16.msra.mxu0 %v222
    %285 = vmatprep.subr.bf16.mxu0 0
    %286 = vmatpush1.bf16.msra.mxu0 %v223
    %287 = vmatprep.subr.bf16.mxu0 0
    %288 = vmatpush1.bf16.msra.mxu0 %v224
    %289 = vmatprep.subr.bf16.mxu0 0
    %290 = vmatpush1.bf16.msra.mxu0 %v225
    %291 = vmatprep.subr.bf16.mxu0 0
    %292 = vmatpush1.bf16.msra.mxu0 %v226
    %293 = vmatprep.subr.bf16.mxu0 0
    %294 = vmatpush1.bf16.msra.mxu0 %v267
    %295 = vmatprep.subr.bf16.mxu0 0
    %296 = vmatpush1.bf16.msra.mxu0 0
    %297 = vmatprep.subr.bf16.mxu0 0
    %298 = vmatpush1.bf16.msra.mxu0 0
    %299 = vmatprep.subr.bf16.mxu0 0
    %300 = vmatpush1.bf16.msra.mxu0 0
    %301 = vmatprep.mubr.bf16.mxu0 %v242
    %302 = vmatmul.mubr.bf16.gmra.mrb[0].mxu0 %v141
    %v303 = vpop.f32.mrb[0].mxu0
    %v304 = vadd.f32 0.0, %v303
    %v305 = vpop.f32.mrb[0].mxu0
    %v306 = vpop.f32.mrb[0].mxu0
    %v307 = vadd.f32 0.0, %v306
    %v308 = vpop.f32.mrb[0].mxu0
    %309 = vmatprep.mubr.bf16.mxu0 %v245
    %310 = vmatmul.mubr.bf16.gmra.mrb[0].mxu0 %v143
    %v311 = vpop.f32.mrb[0].mxu0
    %v312 = vadd.f32 0.0, %v311
    %v313 = vpop.f32.mrb[0].mxu0
    %v314 = vpop.f32.mrb[0].mxu0
    %v315 = vadd.f32 0.0, %v314
    %v316 = vpop.f32.mrb[0].mxu0
    %317 = vmatprep.mubr.bf16.mxu0 %v248
    %318 = vmatmul.mubr.bf16.gmra.mrb[0].mxu0 %v145
    %v319 = vpop.f32.mrb[0].mxu0
    %v320 = vadd.f32 0.0, %v319
    %v321 = vpop.f32.mrb[0].mxu0
    %v322 = vpop.f32.mrb[0].mxu0
    %v323 = vadd.f32 0.0, %v322
    %v324 = vpop.f32.mrb[0].mxu0
    %325 = vmatprep.mubr.bf16.mxu0 %v251
    %326 = vmatmul.mubr.bf16.gmra.mrb[0].mxu0 %v147
    %v327 = vpop.f32.mrb[0].mxu0
    %v328 = vadd.f32 0.0, %v327
    %v329 = vpop.f32.mrb[0].mxu0
    %v330 = vpop.f32.mrb[0].mxu0
    %v331 = vadd.f32 0.0, %v330
    %v332 = vpop.f32.mrb[0].mxu0
    %333 = vmatprep.mubr.bf16.mxu0 %v254
    %334 = vmatmul.mubr.bf16.gmra.mrb[0].mxu0 %v149
    %v335 = vpop.f32.mrb[0].mxu0
    %v336 = vadd.f32 0.0, %v335
    %v337 = vpop.f32.mrb[0].mxu0
    %v338 = vpop.f32.mrb[0].mxu0
    %v339 = vadd.f32 0.0, %v338
    %v340 = vpop.f32.mrb[0].mxu0
    %341 = vmatprep.mubr.bf16.mxu0 %v257
    %342 = vmatmul.mubr.bf16.gmra.mrb[0].mxu0 %v151
    %v343 = vpop.f32.mrb[0].mxu0
    %v344 = vadd.f32 0.0, %v343
    %v345 = vpop.f32.mrb[0].mxu0
    %v346 = vpop.f32.mrb[0].mxu0
    %v347 = vadd.f32 0.0, %v346
    %v348 = vpop.f32.mrb[0].mxu0
    %349 = vmatprep.mubr.bf16.mxu0 %v260
    %350 = vmatmul.mubr.bf16.gmra.mrb[0].mxu0 %v153
    %v351 = vpop.f32.mrb[0].mxu0
    %v352 = vadd.f32 0.0, %v351
    %v353 = vpop.f32.mrb[0].mxu0
    %v354 = vpop.f32.mrb[0].mxu0
    %v355 = vadd.f32 0.0, %v354
    %v356 = vpop.f32.mrb[0].mxu0
    %357 = vmatprep.mubr.bf16.mxu0 %v263
    %358 = vmatmul.mubr.bf16.gmra.mrb[0].mxu0 %v155
    %v359 = vpop.f32.mrb[0].mxu0
    %v360 = vadd.f32 0.0, %v359
    %v361 = vpop.f32.mrb[0].mxu0
    %v362 = vpop.f32.mrb[0].mxu0
    %v363 = vadd.f32 0.0, %v362
    %v364 = vpop.f32.mrb[0].mxu0
    %365 = vdwg.mxu0
    %v366 = vadd.f32 %v36, %v304
    %v367 = vadd.f32 %v37, %v307
    %v368 = vadd.f32 %v38, %v312
    %v369 = vadd.f32 %v39, %v315
    %v370 = vadd.f32 %v40, %v320
    %v371 = vadd.f32 %v41, %v323
    %v372 = vadd.f32 %v42, %v328
    %v373 = vadd.f32 %v43, %v331
    %v374 = vadd.f32 %v44, %v336
    %v375 = vadd.f32 %v45, %v339
    %v376 = vadd.f32 %v46, %v344
    %v377 = vadd.f32 %v47, %v347
    %v378 = vadd.f32 %v48, %v352
    %v379 = vadd.f32 %v49, %v355
    %v380 = vadd.f32 %v50, %v360
    %v381 = vadd.f32 %v51, %v363
    %vm382 = vcmask 523264
    %383 = vst.msk [vmem:[#allocation2] sm:$0xff] %vm382, %v366
    %384 = vst.msk [vmem:[#allocation2 + $0x8] sm:$0xff] %vm382, %v367
    %385 = vst.msk [vmem:[#allocation2 + $0x10] sm:$0xff] %vm382, %v368
    %386 = vst.msk [vmem:[#allocation2 + $0x18] sm:$0xff] %vm382, %v369
    %387 = vst.msk [vmem:[#allocation2 + $0x20] sm:$0xff] %vm382, %v370
    %388 = vst.msk [vmem:[#allocation2 + $0x28] sm:$0xff] %vm382, %v371
    %389 = vst.msk [vmem:[#allocation2 + $0x30] sm:$0xff] %vm382, %v372
    %390 = vst.msk [vmem:[#allocation2 + $0x38] sm:$0xff] %vm382, %v373
    %391 = vst.msk [vmem:[#allocation2 + $0x40] sm:$0xff] %vm382, %v374
    %392 = vst.msk [vmem:[#allocation2 + $0x48] sm:$0xff] %vm382, %v375
    %393 = vst.msk [vmem:[#allocation2 + $0x50] sm:$0xff] %vm382, %v376
    %394 = vst.msk [vmem:[#allocation2 + $0x58] sm:$0xff] %vm382, %v377
    %395 = vst.msk [vmem:[#allocation2 + $0x60] sm:$0xff] %vm382, %v378
    %396 = vst.msk [vmem:[#allocation2 + $0x68] sm:$0xff] %vm382, %v379
    %397 = vst.msk [vmem:[#allocation2 + $0x70] sm:$0xff] %vm382, %v380
    %398 = vst.msk [vmem:[#allocation2 + $0x78] sm:$0xff] %vm382, %v381
    // Predicated region
    $region14: #{tpu_custom_call.1} parent=1 // pred_check
      %p399 = pneg %p15
    $region15: #{tpu_custom_call.1} parent=1 // pred_check_branch
      %401 = sbr.rel (%p399) target = $region17
    $region16: #{tpu_custom_call.1} parent=1 // pred_region
      %v402 = vld [vmem:[#allocation2] sm:$0xff]
      %v403 = vld [vmem:[#allocation2 + $0x8] sm:$0xff]
      %v404 = vld [vmem:[#allocation2 + $0x10] sm:$0xff]
      %v405 = vld [vmem:[#allocation2 + $0x18] sm:$0xff]
      %v406 = vld [vmem:[#allocation2 + $0x20] sm:$0xff]
      %v407 = vld [vmem:[#allocation2 + $0x28] sm:$0xff]
      %v408 = vld [vmem:[#allocation2 + $0x30] sm:$0xff]
      %v409 = vld [vmem:[#allocation2 + $0x38] sm:$0xff]
      %v410 = vld [vmem:[#allocation2 + $0x40] sm:$0xff]
      %v411 = vld [vmem:[#allocation2 + $0x48] sm:$0xff]
      %v412 = vld [vmem:[#allocation2 + $0x50] sm:$0xff]
      %v413 = vld [vmem:[#allocation2 + $0x58] sm:$0xff]
      %v414 = vld [vmem:[#allocation2 + $0x60] sm:$0xff]
      %v415 = vld [vmem:[#allocation2 + $0x68] sm:$0xff]
      %v416 = vld [vmem:[#allocation2 + $0x70] sm:$0xff]
      %v417 = vld [vmem:[#allocation2 + $0x78] sm:$0xff]
      %v418 = vpack.c.bf16 %v403, %v402
      %v419 = vpack.c.bf16 %v405, %v404
      %v420 = vpack.c.bf16 %v407, %v406
      %v421 = vpack.c.bf16 %v409, %v408
      %v422 = vpack.c.bf16 %v411, %v410
      %v423 = vpack.c.bf16 %v413, %v412
      %v424 = vpack.c.bf16 %v415, %v414
      %v425 = vpack.c.bf16 %v417, %v416
      %v434 = vunpack.c.l.b16 %v418
      %v435 = vunpack.c.h.b16 %v418
      %v436 = vunpack.c.l.b16 %v419
      %v437 = vunpack.c.h.b16 %v419
      %v438 = vunpack.c.l.b16 %v420
      %v439 = vunpack.c.h.b16 %v420
      %v440 = vunpack.c.l.b16 %v421
      %v441 = vunpack.c.h.b16 %v421
      %v442 = vunpack.c.l.b16 %v422
      %v443 = vunpack.c.h.b16 %v422
      %v444 = vunpack.c.l.b16 %v423
      %v445 = vunpack.c.h.b16 %v423
      %v446 = vunpack.c.l.b16 %v424
      %v447 = vunpack.c.h.b16 %v424
      %v448 = vunpack.c.l.b16 %v425
      %v449 = vunpack.c.h.b16 %v425
      %v450 = vpack.c.b16 %v434, %v434
      %v451 = vpack.c.b16 %v435, %v435
      %v452 = vpack.c.b16 %v436, %v436
      %v453 = vpack.c.b16 %v437, %v437
      %v454 = vpack.c.b16 %v438, %v438
      %v455 = vpack.c.b16 %v439, %v439
      %v456 = vpack.c.b16 %v440, %v440
      %v457 = vpack.c.b16 %v441, %v441
      %v458 = vpack.c.b16 %v442, %v442
      %v459 = vpack.c.b16 %v443, %v443
      %v460 = vpack.c.b16 %v444, %v444
      %v461 = vpack.c.b16 %v445, %v445
      %v462 = vpack.c.b16 %v446, %v446
      %v463 = vpack.c.b16 %v447, %v447
      %v464 = vpack.c.b16 %v448, %v448
      %v465 = vpack.c.b16 %v449, %v449
      %vm482 = vcmask 519168
      %483 = vst.msk [vmem:[%s2] sm:$0xf] %vm482, %v450
      %484 = vst.msk [vmem:[%s2 + $0x4] sm:$0xf] %vm482, %v451
      %485 = vst.msk [vmem:[%s2 + $0x8] sm:$0xf] %vm482, %v452
      %486 = vst.msk [vmem:[%s2 + $0xc] sm:$0xf] %vm482, %v453
      %487 = vst.msk [vmem:[%s2 + $0x10] sm:$0xf] %vm482, %v454
      %488 = vst.msk [vmem:[%s2 + $0x14] sm:$0xf] %vm482, %v455
      %489 = vst.msk [vmem:[%s2 + $0x18] sm:$0xf] %vm482, %v456
      %490 = vst.msk [vmem:[%s2 + $0x1c] sm:$0xf] %vm482, %v457
      %491 = vst.msk [vmem:[%s2 + $0x20] sm:$0xf] %vm482, %v458
      %492 = vst.msk [vmem:[%s2 + $0x24] sm:$0xf] %vm482, %v459
      %493 = vst.msk [vmem:[%s2 + $0x28] sm:$0xf] %vm482, %v460
      %494 = vst.msk [vmem:[%s2 + $0x2c] sm:$0xf] %vm482, %v461
      %495 = vst.msk [vmem:[%s2 + $0x30] sm:$0xf] %vm482, %v462
      %496 = vst.msk [vmem:[%s2 + $0x34] sm:$0xf] %vm482, %v463
      %497 = vst.msk [vmem:[%s2 + $0x38] sm:$0xf] %vm482, %v464
      %498 = vst.msk [vmem:[%s2 + $0x3c] sm:$0xf] %vm482, %v465
      %v499 = vsel %vm382, %v402, 0.0
      %v500 = vsel %vm382, %v403, 0.0
      %v501 = vadd.f32 %v499, %v500
      %v502 = vsel %vm382, %v404, 0.0
      %v503 = vadd.f32 %v501, %v502
      %v504 = vsel %vm382, %v405, 0.0
      %v505 = vadd.f32 %v503, %v504
      %v506 = vsel %vm382, %v406, 0.0
      %v507 = vadd.f32 %v505, %v506
      %v508 = vsel %vm382, %v407, 0.0
      %v509 = vadd.f32 %v507, %v508
      %v510 = vsel %vm382, %v408, 0.0
      %v511 = vadd.f32 %v509, %v510
      %v512 = vsel %vm382, %v409, 0.0
      %v513 = vadd.f32 %v511, %v512
      %v514 = vsel %vm382, %v410, 0.0
      %v515 = vadd.f32 %v513, %v514
      %v516 = vsel %vm382, %v411, 0.0
      %v517 = vadd.f32 %v515, %v516
      %v518 = vsel %vm382, %v412, 0.0
      %v519 = vadd.f32 %v517, %v518
      %v520 = vsel %vm382, %v413, 0.0
      %v521 = vadd.f32 %v519, %v520
      %v522 = vsel %vm382, %v414, 0.0
      %v523 = vadd.f32 %v521, %v522
      %v524 = vsel %vm382, %v415, 0.0
      %v525 = vadd.f32 %v523, %v524
      %v526 = vsel %vm382, %v416, 0.0
      %v527 = vadd.f32 %v525, %v526
      %v528 = vsel %vm382, %v417, 0.0
      %v529 = vadd.f32 %v527, %v528
      %v530 = vrot.slane %v529, 4
      %v531 = vadd.f32 %v529, %v530
      %v532 = vrot.slane %v531, 2
      %v533 = vadd.f32 %v531, %v532
      %v534 = vrot.slane %v533, 1
      %v535 = vadd.f32 %v533, %v534
      %vm536 = vcmask 516096
      %537 = vst.msk [vmem:[#allocation3] sm:$0x1] %vm536, %v535
      %v538 = vmul.f32 %v402, %v402
      %v539 = vmul.f32 %v403, %v403
      %v540 = vmul.f32 %v404, %v404
      %v541 = vmul.f32 %v405, %v405
      %v542 = vmul.f32 %v406, %v406
      %v543 = vmul.f32 %v407, %v407
      %v544 = vmul.f32 %v408, %v408
      %v545 = vmul.f32 %v409, %v409
      %v546 = vmul.f32 %v410, %v410
      %v547 = vmul.f32 %v411, %v411
      %v548 = vmul.f32 %v412, %v412
      %v549 = vmul.f32 %v413, %v413
      %v550 = vmul.f32 %v414, %v414
      %v551 = vmul.f32 %v415, %v415
      %v552 = vmul.f32 %v416, %v416
      %v553 = vmul.f32 %v417, %v417
      %v554 = vsel %vm382, %v538, 0.0
      %v555 = vsel %vm382, %v539, 0.0
      %v556 = vadd.f32 %v554, %v555
      %v557 = vsel %vm382, %v540, 0.0
      %v558 = vadd.f32 %v556, %v557
      %v559 = vsel %vm382, %v541, 0.0
      %v560 = vadd.f32 %v558, %v559
      %v561 = vsel %vm382, %v542, 0.0
      %v562 = vadd.f32 %v560, %v561
      %v563 = vsel %vm382, %v543, 0.0
      %v564 = vadd.f32 %v562, %v563
      %v565 = vsel %vm382, %v544, 0.0
      %v566 = vadd.f32 %v564, %v565
      %v567 = vsel %vm382, %v545, 0.0
      %v568 = vadd.f32 %v566, %v567
      %v569 = vsel %vm382, %v546, 0.0
      %v570 = vadd.f32 %v568, %v569
      %v571 = vsel %vm382, %v547, 0.0
      %v572 = vadd.f32 %v570, %v571
      %v573 = vsel %vm382, %v548, 0.0
      %v574 = vadd.f32 %v572, %v573
      %v575 = vsel %vm382, %v549, 0.0
      %v576 = vadd.f32 %v574, %v575
      %v577 = vsel %vm382, %v550, 0.0
      %v578 = vadd.f32 %v576, %v577
      %v579 = vsel %vm382, %v551, 0.0
      %v580 = vadd.f32 %v578, %v579
      %v581 = vsel %vm382, %v552, 0.0
      %v582 = vadd.f32 %v580, %v581
      %v583 = vsel %vm382, %v553, 0.0
      %v584 = vadd.f32 %v582, %v583
      %v585 = vrot.slane %v584, 4
      %v586 = vadd.f32 %v584, %v585
      %v587 = vrot.slane %v586, 2
      %v588 = vadd.f32 %v586, %v587
      %v589 = vrot.slane %v588, 1
      %v590 = vadd.f32 %v588, %v589
      %591 = vst.msk [vmem:[#allocation3 + $0x1] sm:$0x1] %vm536, %v590
    $region17: #{tpu_custom_call.1} parent=1 // pred_fallthru
      _
    // Predicated region
    $region18: #{tpu_custom_call.1} parent=1 // pred_check
      _
    $region19: #{tpu_custom_call.1} parent=1 // pred_check_branch
      %593 = sbr.rel (0) target = $region21
    $region20: #{tpu_custom_call.1} parent=1 // pred_region
      _
    $region21: #{tpu_custom_call.1} parent=1 // pred_fallthru
      _
    // Predicated region
    $region22: #{tpu_custom_call.1} parent=1 // pred_check
      _
    $region23: #{tpu_custom_call.1} parent=1 // pred_check_branch
      %595 = sbr.rel (0) target = $region25
    $region24: #{tpu_custom_call.1} parent=1 // pred_region
      %s597 = ssub.s32 32, 32
      %598 = vsyncadd [#allocation4], %s597
      %s600 = sshll.u32 [#allocation3], 4
      %s601 = int_to_ptr.vmem [resolvable:$true] %s600
      %603 = dma.vmem_to_hbm [thread:$0]  %s601, 32, %s3, [#allocation4]
    $region25: #{tpu_custom_call.1} parent=1 // pred_fallthru
      _
    // Predicated region
    $region26: #{tpu_custom_call.1} parent=1 // pred_check
      _
    $region27: #{tpu_custom_call.1} parent=1 // pred_check_branch
      %605 = sbr.rel (0) target = $region29
    $region28: #{tpu_custom_call.1} parent=1 // pred_region
      _
    $region29: #{tpu_custom_call.1} parent=1 // pred_fallthru
      _
    // Predicated region
    $region30: #{tpu_custom_call.1} parent=1 // pred_check
      _
    $region31: #{tpu_custom_call.1} parent=1 // pred_check_branch
      %607 = sbr.rel (0) target = $region33
    $region32: #{tpu_custom_call.1} parent=1 // pred_region
      %608 = dma.done [#allocation4], 32
    $region33: #{tpu_custom_call.1} parent=1 // pred_fallthru
      _
    %609 = vsyncpa [#allocation4], 1

</llo_original>
